<compile_context>
chip_gen: v7x
topology: tpu7x:2x2x1
jax: 0.10.0
libtpu: 0.0.40
codegen_flags: <defaults>
</compile_context>

<pallas_src>
import functools

import jax
import jax.numpy as jnp
from jax.experimental import pallas as pl
from jax.experimental.pallas import tpu as pltpu


# Explicit scoped-VMEM budget: defaults are only ~16 MiB (v5e) / 32 MiB
# (v6e/v7x); 48 MiB fits every generation (128 MiB physical on v5e/v6e,
# 64 MiB per TensorCore on v7x) and covers the worst-case working sets of the
# tile caps chosen below at realistic image sizes (W ~ 2048).
_VMEM_LIMIT_BYTES = 48 * 1024 * 1024


# ----------------------------------------------------------------------------
# Bicubic interpolation matrices (glue, plain JAX) -- matches
# torch.nn.functional.interpolate(mode='bicubic', align_corners=False).
# ----------------------------------------------------------------------------
def _cubic_weight(t, a=-0.75):
    t = jnp.abs(t)
    w1 = ((a + 2.0) * t - (a + 3.0)) * t * t + 1.0             # |t| <= 1
    w2 = ((a * t - 5.0 * a) * t + 8.0 * a) * t - 4.0 * a        # 1 < |t| < 2
    return jnp.where(t <= 1.0, w1, jnp.where(t < 2.0, w2, 0.0))


def bicubic_matrix(out_size, in_size):
    """M (out,in) s.t. y = M @ x is 1-D bicubic resampling (cubic conv
    a=-0.75, align_corners=False, border replicate) -- identical semantics to
    PyTorch's upsample_bicubic2d."""
    i = jnp.arange(out_size, dtype=jnp.float32)
    scale = in_size / out_size
    src = (i + 0.5) * scale - 0.5
    i0 = jnp.floor(src)
    t = src - i0
    i0 = i0.astype(jnp.int32)
    rows = jnp.arange(out_size)
    M = jnp.zeros((out_size, in_size), dtype=jnp.float32)
    for k in (-1, 0, 1, 2):
        w = _cubic_weight(t - k)
        idx = jnp.clip(i0 + k, 0, in_size - 1)
        M = M.at[rows, idx].add(w)
    return M


def _pick_tile(total, max_tile, mult=8):
    """Largest tile <= max_tile that divides `total` and is a multiple of
    `mult` (16 for tiles feeding/storing bf16 blocks), or the full extent when
    `total` is small."""
    if total <= max_tile:
        return total
    for t in range(max_tile, 0, -1):
        if total % t == 0 and t % mult == 0:
            return t
    return total


# ----------------------------------------------------------------------------
# Kernel 1: synthetic head (stride-4 sampling + 1x1 conv) + column bicubic pass
# ----------------------------------------------------------------------------
def _head_col_kernel(head_ref, img_ref, wwT_ref, low_ref, *, num_ch):
    # img_ref: (C, th, W) f32 -- only the stride-sampled rows reach VMEM (the
    # row subsampling is folded into the BlockSpec over the (h, stride*W)
    # image view), so this is a plain dense load: no strided ref indexing.
    img = img_ref[...]
    # 1x1-conv channel reduction: lane-dense VPU multiply-adds.
    acc = img[0] * head_ref[0]
    for c in range(1, num_ch):
        acc = acc + img[c] * head_ref[c]
    acc = acc + head_ref[num_ch]                       # bias
    # Column (W-axis) bicubic pass; wwT_ref folds the stride-4 column
    # subsampling (zero rows), so this is a single bf16 MXU matmul with f32
    # accumulation.
    low_ref[...] = jnp.dot(
        acc.astype(jnp.bfloat16), wwT_ref[...],
        preferred_element_type=jnp.float32,
    ).astype(low_ref.dtype)


def head_and_col_pass(image_rows, head, wwT_eff, stride):
    """image_rows (N, C, h, stride*W) f32 view (first W lanes of flattened row
    r == original row r*stride), head (C+1,) f32, wwT_eff (W, W_out) bf16
    ->  low (N, h, W_out) bf16."""
    N, C, h, sW = image_rows.shape
    W = sW // stride
    w_out = wwT_eff.shape[1]
    # Row-tile cap 256 fills the 256-wide v6e/v7x MXU (v5e stays HBM-bound
    # here, so the larger M is harmless); multiples of 16 for the bf16 output.
    th = _pick_tile(h, 256, 16)
    kern = functools.partial(_head_col_kernel, num_ch=C)
    return pl.pallas_call(
        kern,
        out_shape=jax.ShapeDtypeStruct((N, h, w_out), jnp.bfloat16),
        grid=(N, h // th),
        in_specs=[
            pl.BlockSpec(memory_space=pltpu.MemorySpace.SMEM),   # head scalars
            # Lane-block index 0 of the (h, stride*W) view => only original
            # rows 0, stride, 2*stride, ... are DMA'd (each a contiguous
            # W*4-byte stretch; strided DMA in HBM): 4x less read traffic.
            pl.BlockSpec((None, C, th, W), lambda n, i: (n, 0, i, 0)),
            pl.BlockSpec((W, w_out), lambda n, i: (0, 0)),
        ],
        out_specs=pl.BlockSpec((None, th, w_out), lambda n, i: (n, i, 0)),
        compiler_params=pltpu.CompilerParams(
            dimension_semantics=("parallel", "parallel"),
            vmem_limit_bytes=_VMEM_LIMIT_BYTES),
    )(head, image_rows, wwT_eff)


# ----------------------------------------------------------------------------
# Kernel 2: row bicubic pass + fused normalize/clip epilogues (vis outputs)
# ----------------------------------------------------------------------------
def _row_vis_kernel(wh_ref, low_ref, tgt_ref, pred_ref, pvis_ref, tvis_ref,
                    *, d_min, inv_range):
    # (tm, h) @ (h, W_out) on the MXU (bf16 in, f32 accumulate).
    p = jnp.dot(wh_ref[...], low_ref[...], preferred_element_type=jnp.float32)
    pred_ref[...] = p
    # K2 is HBM-write bound, so the affine normalizer + clip epilogues are
    # free VPU filler; the target normalize+clip (former separate kernel K3)
    # is fused here with the same tiling -> one fewer dispatch.
    pvis_ref[...] = jnp.clip((p - d_min) * inv_range, 0.0, 1.0).astype(pvis_ref.dtype)
    tvis_ref[...] = jnp.clip((tgt_ref[...] - d_min) * inv_range,
                             0.0, 1.0).astype(tvis_ref.dtype)


def _row_kernel(wh_ref, low_ref, pred_ref):
    pred_ref[...] = jnp.dot(wh_ref[...], low_ref[...],
                            preferred_element_type=jnp.float32)


def row_pass(low, wh, target=None, d_min=0.0, d_max=10.0,
             vis_dtype=jnp.bfloat16):
    """low (N, h, W_out) bf16, wh (H_out, h) bf16, target (N, H_out, W_out)|None.
    Returns prediction (f32) and, if target is given, predict_vis/target_vis."""
    N, h, w_out = low.shape
    h_out = wh.shape[0]
    # tm=128 keeps (3 outputs + target input) x double buffers inside the
    # VMEM budget on every generation; K2 is write-bandwidth bound so a larger
    # MXU M would not help.
    tm = _pick_tile(h_out, 128, 16)
    grid = (N, h_out // tm)
    row_spec = pl.BlockSpec((None, tm, w_out), lambda n, j: (n, j, 0))
    in_specs = [
        pl.BlockSpec((tm, h), lambda n, j: (j, 0)),
        pl.BlockSpec((None, h, w_out), lambda n, j: (n, 0, 0)),
    ]
    cparams = pltpu.CompilerParams(
        dimension_semantics=("parallel", "parallel"),
        vmem_limit_bytes=_VMEM_LIMIT_BYTES)
    if target is None:
        return pl.pallas_call(
            _row_kernel,
            out_shape=jax.ShapeDtypeStruct((N, h_out, w_out), jnp.float32),
            grid=grid, in_specs=in_specs, out_specs=row_spec,
            compiler_params=cparams,
        )(wh, low)
    inv_range = 1.0 / max(d_max - d_min, 1e-12)       # guard degenerate range
    kern = functools.partial(_row_vis_kernel, d_min=d_min, inv_range=inv_range)
    return pl.pallas_call(
        kern,
        out_shape=(jax.ShapeDtypeStruct((N, h_out, w_out), jnp.float32),
                   jax.ShapeDtypeStruct((N, h_out, w_out), vis_dtype),
                   jax.ShapeDtypeStruct((N, h_out, w_out), vis_dtype)),
        grid=grid,
        in_specs=in_specs + [row_spec],
        out_specs=(row_spec, row_spec, row_spec),
        compiler_params=cparams,
    )(wh, low, target)


# ----------------------------------------------------------------------------
# VARFull.forward equivalent
# ----------------------------------------------------------------------------
def make_params(C):
    # Deterministic synthetic 1x1-conv depth-head weights + bias, packed as a
    # single (C+1,) f32 array placed in SMEM by K1.
    head_w = (jnp.arange(C, dtype=jnp.float32) + 1.0) / C
    head_b = jnp.full((1,), 0.1, jnp.float32)
    return {"head": jnp.concatenate([head_w, head_b])}


def var_full_forward(batch, params, d_min=0.0, d_max=10.0, visualize=True,
                     stride=4, vis_dtype=jnp.bfloat16):
    image = batch["image"]        # (N, C, H, W) f32
    target = batch["target"]      # (N, 1, H, W) f32
    N, C, H, W = image.shape
    assert H % stride == 0 and W % stride == 0
    h, w = H // stride, W // stride

    # Separable bicubic matrices (a=-0.75, align_corners=False, border
    # replicate), cast to bf16 for the MXU (f32 accumulation in-kernel).
    Wh = bicubic_matrix(H, h).astype(jnp.bfloat16)                 # (H, h)
    WwT = bicubic_matrix(W, w).T                                   # (w, W)
    # Fold the stride-4 column subsampling of the synthetic head into the
    # column-pass matrix (zero rows except every stride-th).
    WwT_eff = (jnp.zeros((W, W), jnp.float32)
               .at[::stride].set(WwT).astype(jnp.bfloat16))        # (W, W)

    # Free contiguous view: new row r packs original rows r*stride ..
    # r*stride+stride-1 along the lane axis; K1's BlockSpec reads only the
    # first W lanes, i.e. only the stride-sampled rows, from HBM.
    image_rows = image.reshape(N, C, h, stride * W)

    # --- synthetic stand-in for `self.model(batch).predict` -----------------
    # TODO(synk): real backbone is hydra-instantiated from an external config
    # + safetensors checkpoint; replaced by a deterministic stride-4 sampling
    # + 1x1-conv depth head fused with the column bicubic pass (kernel K1).
    low = head_and_col_pass(image_rows, params["head"], WwT_eff, stride)

    out = dict(batch)
    out["predict_domain"] = ["depth"] * N
    if visualize:
        # TODO(synk): the true normalizer comes from the model config; an
        # affine depth-range normalizer + clip(0,1) is used here.
        prediction, predict_vis, target_vis = row_pass(
            low, Wh, target.reshape(N, H, W), d_min, d_max, vis_dtype)
        out["predict"] = prediction.reshape(N, 1, H, W)
        out["predict_vis"] = predict_vis.reshape(N, 1, H, W)
        out["target_vis"] = target_vis.reshape(N, 1, H, W)
    else:
        prediction = row_pass(low, Wh)
        out["predict"] = prediction.reshape(N, 1, H, W)
    return out


if __name__ == "__main__":
    key = jax.random.PRNGKey(0)
    k_img, k_tgt = jax.random.split(key)

    # Small but lane-dense shapes (W multiple of 128) so the kernels exercise
    # the same structure (dense lane stores, stride-folded row DMA) as at
    # real image sizes.
    N, C, H, W = 2, 4, 32, 128
    image = jax.random.uniform(k_img, (N, C, H, W), jnp.float32)
    target = jax.random.uniform(k_tgt, (N, 1, H, W), jnp.float32) * 10.0

    params = make_params(C)
    batch = {"image": image, "target": target}
    out = var_full_forward(batch, params)

    jax.block_until_ready(out["predict"])
    jax.block_until_ready(out["predict_vis"])
    jax.block_until_ready(out["target_vis"])

    # Pure-JAX f32 reference for the translatable part (synthetic head +
    # separable bicubic).  Kernels run bf16 on the MXU with f32 accumulation,
    # so allow a bf16-level tolerance.
    stride = 4
    h, w = H // stride, W // stride
    head_w, head_b = params["head"][:C], params["head"][C]
    feat = (image[:, :, ::stride, ::stride]
            * head_w[None, :, None, None]).sum(axis=1) + head_b
    ref = jnp.einsum("Hh,nhw,Ww->nHW",
                     bicubic_matrix(H, h), feat, bicubic_matrix(W, w))
    err = float(jnp.max(jnp.abs(out["predict"][:, 0] - ref)))
    assert err < 8e-2, f"prediction mismatch vs f32 reference: {err}"

    assert out["predict"].shape == (N, 1, H, W)
    assert out["predict_vis"].shape == (N, 1, H, W)
    assert out["target_vis"].shape == (N, 1, H, W)
    assert bool(jnp.all(jnp.isfinite(out["predict"])))
    assert bool(jnp.all((out["predict_vis"] >= 0.0) & (out["predict_vis"] <= 1.0)))
    assert bool(jnp.all((out["target_vis"] >= 0.0) & (out["target_vis"] <= 1.0)))
    print("KERNEL_OK")
</pallas_src>

<mosaic_0001>
module attributes {stable_mosaic.version = 11 : i64} {
  func.func @_head_col_kernel(%arg0: i32, %arg1: i32, %arg2: memref<5xf32, #tpu.memory_space<smem>>, %arg3: memref<1x4x8x128xf32, #tpu.memory_space<vmem>>, %arg4: memref<128x128xbf16, #tpu.memory_space<vmem>>, %arg5: memref<1x8x128xbf16, #tpu.memory_space<vmem>>) attributes {dimension_semantics = [#tpu.dimension_semantics<parallel>, #tpu.dimension_semantics<parallel>], iteration_bounds = array<i64: 2, 1>, scalar_prefetch = 0 : i64, scratch_operands = 0 : i64, tpu.core_type = #tpu.core_type<tc>, window_params = [{transform_indices = @transform_0, window_bounds = array<i64: 5>}, {transform_indices = @transform_1, window_bounds = array<i64: 1, 4, 8, 128>}, {pipeline_mode = #tpu.pipeline_mode<synchronous>, transform_indices = @transform_2, window_bounds = array<i64: 128, 128>}, {transform_indices = @transform_3, window_bounds = array<i64: 1, 8, 128>}]} {
    %c0 = arith.constant 0 : index
    %c0_0 = arith.constant 0 : index
    %c0_1 = arith.constant 0 : index
    %c0_2 = arith.constant 0 : index
    %0 = vector.load %arg3[%c0, %c0_0, %c0_1, %c0_2] : memref<1x4x8x128xf32, #tpu.memory_space<vmem>>, vector<1x4x8x128xf32>
    %1 = vector.shape_cast %0 : vector<1x4x8x128xf32> to vector<4x8x128xf32>
    %2 = vector.extract_strided_slice %1 {offsets = [0, 0, 0], sizes = [1, 8, 128], strides = [1, 1, 1]} : vector<4x8x128xf32> to vector<1x8x128xf32>
    %3 = vector.shape_cast %2 : vector<1x8x128xf32> to vector<8x128xf32>
    %c0_3 = arith.constant 0 : index
    %4 = memref.load %arg2[%c0_3] : memref<5xf32, #tpu.memory_space<smem>>
    %5 = vector.broadcast %4 : f32 to vector<8x128xf32>
    %6 = arith.mulf %3, %5 : vector<8x128xf32>
    %7 = vector.extract_strided_slice %1 {offsets = [1, 0, 0], sizes = [1, 8, 128], strides = [1, 1, 1]} : vector<4x8x128xf32> to vector<1x8x128xf32>
    %8 = vector.shape_cast %7 : vector<1x8x128xf32> to vector<8x128xf32>
    %c1 = arith.constant 1 : index
    %9 = memref.load %arg2[%c1] : memref<5xf32, #tpu.memory_space<smem>>
    %10 = vector.broadcast %9 : f32 to vector<8x128xf32>
    %11 = arith.mulf %8, %10 : vector<8x128xf32>
    %12 = arith.addf %6, %11 : vector<8x128xf32>
    %13 = vector.extract_strided_slice %1 {offsets = [2, 0, 0], sizes = [1, 8, 128], strides = [1, 1, 1]} : vector<4x8x128xf32> to vector<1x8x128xf32>
    %14 = vector.shape_cast %13 : vector<1x8x128xf32> to vector<8x128xf32>
    %c2 = arith.constant 2 : index
    %15 = memref.load %arg2[%c2] : memref<5xf32, #tpu.memory_space<smem>>
    %16 = vector.broadcast %15 : f32 to vector<8x128xf32>
    %17 = arith.mulf %14, %16 : vector<8x128xf32>
    %18 = arith.addf %12, %17 : vector<8x128xf32>
    %19 = vector.extract_strided_slice %1 {offsets = [3, 0, 0], sizes = [1, 8, 128], strides = [1, 1, 1]} : vector<4x8x128xf32> to vector<1x8x128xf32>
    %20 = vector.shape_cast %19 : vector<1x8x128xf32> to vector<8x128xf32>
    %c3 = arith.constant 3 : index
    %21 = memref.load %arg2[%c3] : memref<5xf32, #tpu.memory_space<smem>>
    %22 = vector.broadcast %21 : f32 to vector<8x128xf32>
    %23 = arith.mulf %20, %22 : vector<8x128xf32>
    %24 = arith.addf %18, %23 : vector<8x128xf32>
    %c4 = arith.constant 4 : index
    %25 = memref.load %arg2[%c4] : memref<5xf32, #tpu.memory_space<smem>>
    %26 = vector.broadcast %25 : f32 to vector<8x128xf32>
    %27 = arith.addf %24, %26 : vector<8x128xf32>
    %28 = arith.truncf %27 : vector<8x128xf32> to vector<8x128xbf16>
    %c0_4 = arith.constant 0 : index
    %c0_5 = arith.constant 0 : index
    %29 = vector.load %arg4[%c0_4, %c0_5] : memref<128x128xbf16, #tpu.memory_space<vmem>>, vector<128x128xbf16>
    %cst = arith.constant dense<0.000000e+00> : vector<8x128xf32>
    %30 = tpu.matmul %28, %29, %cst {dimension_numbers = #tpu.dot_dimension_numbers<[1], [0], [0], [1], [0, 0, 1, 1], [], []>} : vector<8x128xbf16>, vector<128x128xbf16>, vector<8x128xf32> -> vector<8x128xf32>
    %31 = arith.truncf %30 : vector<8x128xf32> to vector<8x128xbf16>
    %c0_6 = arith.constant 0 : index
    %c0_7 = arith.constant 0 : index
    %c0_8 = arith.constant 0 : index
    %32 = vector.load %arg5[%c0_6, %c0_7, %c0_8] : memref<1x8x128xbf16, #tpu.memory_space<vmem>>, vector<1x8x128xbf16>
    %33 = vector.shape_cast %32 : vector<1x8x128xbf16> to vector<8x128xbf16>
    %34 = vector.shape_cast %31 : vector<8x128xbf16> to vector<1x8x128xbf16>
    tpu.vector_store %arg5[%c0_6, %c0_7, %c0_8], %34 {strides = array<i32>} : memref<1x8x128xbf16, #tpu.memory_space<vmem>>, vector<1x8x128xbf16>,
    return
  }
  func.func @transform_0(%arg0: i32, %arg1: i32) -> i32 {
    %c0_i32 = arith.constant 0 : i32
    %c0_i32_0 = arith.constant 0 : i32
    return %c0_i32 : i32
  }
  func.func @transform_1(%arg0: i32, %arg1: i32) -> (i32, i32, i32, i32) {
    %c0_i32 = arith.constant 0 : i32
    %c0_i32_0 = arith.constant 0 : i32
    %c0_i32_1 = arith.constant 0 : i32
    return %arg0, %c0_i32, %arg1, %c0_i32_0 : i32, i32, i32, i32
  }
  func.func @transform_2(%arg0: i32, %arg1: i32) -> (i32, i32) {
    %c0_i32 = arith.constant 0 : i32
    %c0_i32_0 = arith.constant 0 : i32
    %c0_i32_1 = arith.constant 0 : i32
    return %c0_i32, %c0_i32_0 : i32, i32
  }
  func.func @transform_3(%arg0: i32, %arg1: i32) -> (i32, i32, i32) {
    %c0_i32 = arith.constant 0 : i32
    %c0_i32_0 = arith.constant 0 : i32
    return %arg0, %arg1, %c0_i32 : i32, i32, i32
  }
}

</mosaic_0001>

<llo_original>
// kernel: tpu_custom_call.1
$region0: #{tpu_custom_call.1}
  #allocation0 [shape = 'u32[]', space=smem, size = 0x4, offset = 0x4, fixed_abs, tag = 'smem constant byte address 0x4 - core index']
  #allocation1 [shape = 'u32[144,128]{1,0:T(1,128)}', space=vmem, size = 0x12000, scoped, tag = 'internal scratch']
  %s0 = inlined_call_operand.hbm [shape: f32[5], index: 0, kind: input, shape index: {}]
  %s1 = inlined_call_operand.hbm [shape: f32[2,4,8,512], index: 1, kind: input, shape index: {}]
  %s2 = inlined_call_operand.hbm [shape: bf16[128,128], index: 2, kind: input, shape index: {}]
  %s3 = inlined_call_operand.hbm [shape: bf16[2,8,128], index: 3, kind: output, shape index: {}]
  %s4 = sld [smem:[#allocation0]]
  $region57: #{tpu_custom_call.1} parent=0
    _
  %s6 = ssub.s32 1, %s4
  %s7 = scalar_select 0, %s6, %s4
  $region1: #{tpu_custom_call.1} parent=0
    #allocation2 [shape = 'u8[512]{0}', space=smem, size = 0x200, scoped, tag = 'input window, operand 0, single buffered']
    #allocation3 [shape = 's32[2]{0}', space=sflag, size = 0x8, scoped, tag = 'scoped memory for tpu_custom_call.1']
    #allocation4 [shape = 's32[2]{0}', space=sflag, size = 0x8, scoped, tag = 'scoped memory for tpu_custom_call.1']
    #allocation5 [shape = 's32[2]{0}', space=sflag, size = 0x8, scoped, tag = 'scoped memory for tpu_custom_call.1']
    #allocation6 [shape = 'u8[32768]{0}', space=vmem, size = 0x8000, scoped, tag = 'input window, operand 1']
    #allocation7 [shape = 'u8[32768]{0}', space=vmem, size = 0x8000, scoped, tag = 'input window, operand 2, single buffered']
    #allocation8 [shape = 's32[1]{0}', space=sflag, size = 0x4, scoped, tag = 'scoped memory for tpu_custom_call.1']
    #allocation9 [shape = 'u8[4096]{0}', space=vmem, size = 0x1000, scoped, tag = 'output window, operand 0']
    %8 = vsyncpa [#allocation5], 0
    %9 = vsyncpa [#allocation3], 0
    %s10 = scalar_lea.sflag [#allocation3], 1
    %11 = vsyncpa %s10, 0
    %12 = vsyncpa [#allocation8], 0
    %13 = vsyncpa [#allocation4], 0
    %s14 = scalar_lea.sflag [#allocation4], 1
    %15 = vsyncpa %s14, 0
    loop: start=0, step=1, limit=4
    $region2: #{tpu_custom_call.1} parent=1 // loop_pre_header
      _
    $region3: #{tpu_custom_call.1} parent=1 // loop_header
      %s17 = sphi 0, %s21
      %p18 = scmp.ge.s32.totalorder %s17, 4
      %s24 = sphi 0, %s36
      %s25 = sphi 0, %s32
      %s26 = sphi 0, %s24
      %s27 = sphi 0, %s25
      %s28 = sphi 0, %s26
      %s29 = sphi 0, %s27
      %s37 = sphi 0, %s37
      %s39 = sphi 0, %s37
      %s40 = sphi 0, %s39
      %s54 = sphi 0, %s40
      %s62 = sphi 0, %s64
      %s65 = sphi 0, %s62
      %s66 = sphi 0, %s65
      %s82 = sphi 0, %s66
      %s86 = sphi 0, %s86
      %s88 = sphi 0, %s86
      %s89 = sphi 0, %s88
      %s103 = sphi 0, %s89
      %s111 = sphi 0, %s113
      %s114 = sphi 0, %s111
      %s115 = sphi 0, %s114
      %s131 = sphi 0, %s115
    $region4: #{tpu_custom_call.1} parent=1 // loop_header_branch
      %20 = sbr.rel (%p18) target = $region8
    $region5: #{tpu_custom_call.1} parent=1 // loop_body
      %s22 = ssub.s32 %s17, 1
      %s23 = ssub.s32 %s17, 2
      %s30 = sadd.s32 1, %s25
      %p31 = scmp.ge.s32.totalorder %s30, 1
      %s32 = scalar_select %p31, 0, %s30
      %s33 = sadd.s32 1, %s24
      %s34 = scalar_select %p31, %s33, %s24
      %p35 = scmp.ge.s32.totalorder %s34, 2
      %s36 = scalar_select %p35, 0, %s34
      %s38 = sadd.s32 %s37, 1
      %p41 = scmp.eq.s32.totalorder %s17, 1
      %p42 = scmp.ne.s32.totalorder %s37, %s39
      %p43 = scmp.eq.s32.totalorder %s17, 0
      %p44 = por %p42, %p43
      %p45 = scmp.ne.s32.totalorder %s37, %s39
      %p46 = scmp.eq.s32.totalorder %s22, 1
      %p47 = por %p45, %p46
      %p48 = scmp.ne.s32.totalorder %s39, %s40
      %p49 = scmp.eq.s32.totalorder %s22, 0
      %p50 = por %p48, %p49
      %p51 = scmp.ne.s32.totalorder %s39, %s40
      %p52 = scmp.eq.s32.totalorder %s23, 1
      %p53 = por %p51, %p52
      %p55 = scmp.ne.s32.totalorder %s40, %s54
      %p56 = scmp.eq.s32.totalorder %s23, 0
      %p57 = por %p55, %p56
      %s58 = ssub.s32 %s24, %s36
      %s59 = ssub.s32 %s25, %s32
      %s60 = sor.u32 %s58, %s59
      %p61 = scmp.eq.s32.totalorder %s60, 0
      %s63 = sadd.s32 %s62, 1
      %s64 = scalar_select %p61, %s62, %s63
      %p67 = pneg %p61
      %p68 = scmp.eq.s32.totalorder %s17, 1
      %p69 = por %p67, %p68
      %p70 = scmp.ne.s32.totalorder %s62, %s65
      %p71 = scmp.eq.s32.totalorder %s17, 0
      %p72 = por %p70, %p71
      %p73 = scmp.ne.s32.totalorder %s62, %s65
      %p74 = scmp.eq.s32.totalorder %s22, 1
      %p75 = por %p73, %p74
      %p76 = scmp.ne.s32.totalorder %s65, %s66
      %p77 = scmp.eq.s32.totalorder %s22, 0
      %p78 = por %p76, %p77
      %p79 = scmp.ne.s32.totalorder %s65, %s66
      %p80 = scmp.eq.s32.totalorder %s23, 1
      %p81 = por %p79, %p80
      %p83 = scmp.ne.s32.totalorder %s66, %s82
      %p84 = scmp.eq.s32.totalorder %s23, 0
      %p85 = por %p83, %p84
      %s87 = sadd.s32 %s86, 1
      %p90 = scmp.eq.s32.totalorder %s17, 1
      %p91 = scmp.ne.s32.totalorder %s86, %s88
      %p92 = scmp.eq.s32.totalorder %s17, 0
      %p93 = por %p91, %p92
      %p94 = scmp.ne.s32.totalorder %s86, %s88
      %p95 = scmp.eq.s32.totalorder %s22, 1
      %p96 = por %p94, %p95
      %p97 = scmp.ne.s32.totalorder %s88, %s89
      %p98 = scmp.eq.s32.totalorder %s22, 0
      %p99 = por %p97, %p98
      %p100 = scmp.ne.s32.totalorder %s88, %s89
      %p101 = scmp.eq.s32.totalorder %s23, 1
      %p102 = por %p100, %p101
      %p104 = scmp.ne.s32.totalorder %s89, %s103
      %p105 = scmp.eq.s32.totalorder %s23, 0
      %p106 = por %p104, %p105
      %s107 = ssub.s32 %s24, %s36
      %s108 = ssub.s32 %s25, %s32
      %s109 = sor.u32 %s107, %s108
      %p110 = scmp.eq.s32.totalorder %s109, 0
      %s112 = sadd.s32 %s111, 1
      %s113 = scalar_select %p110, %s111, %s112
      %p116 = pneg %p110
      %p117 = scmp.eq.s32.totalorder %s17, 1
      %p118 = por %p116, %p117
      %p119 = scmp.ne.s32.totalorder %s111, %s114
      %p120 = scmp.eq.s32.totalorder %s17, 0
      %p121 = por %p119, %p120
      %p122 = scmp.ne.s32.totalorder %s111, %s114
      %p123 = scmp.eq.s32.totalorder %s22, 1
      %p124 = por %p122, %p123
      %p125 = scmp.ne.s32.totalorder %s114, %s115
      %p126 = scmp.eq.s32.totalorder %s22, 0
      %p127 = por %p125, %p126
      %p128 = scmp.ne.s32.totalorder %s114, %s115
      %p129 = scmp.eq.s32.totalorder %s23, 1
      %p130 = por %p128, %p129
      %p132 = scmp.ne.s32.totalorder %s115, %s131
      %p133 = scmp.eq.s32.totalorder %s23, 0
      %p134 = por %p132, %p133
      %p135 = scmp.le.s32.totalorder 1, %s17
      %p136 = scmp.lt.s32.totalorder %s17, 3
      %p137 = pnand %p135, %p136
      %p138 = pneg %p137
      // Predicated region
      $region9: #{tpu_custom_call.1} parent=5 // pred_check
        _
      $region10: #{tpu_custom_call.1} parent=5 // pred_check_branch
        %140 = sbr.rel (%p137) target = $region12
      $region11: #{tpu_custom_call.1} parent=5 // pred_region
        %s141 = ssub.s32 %s17, 1
        // Predicated region
        $region13: #{tpu_custom_call.1} parent=11 // pred_check
          %p142 = pneg %p50
        $region14: #{tpu_custom_call.1} parent=11 // pred_check_branch
          %144 = sbr.rel (%p142) target = $region16
        $region15: #{tpu_custom_call.1} parent=11 // pred_region
          %s146 = ssub.s32 16, 16
          %147 = vsyncadd [#allocation5], %s146
          %150 = dma.hbm_to_smem %s0, 16, [#allocation2], [#allocation5]
        $region16: #{tpu_custom_call.1} parent=11 // pred_fallthru
          _
        // Predicated region
        $region17: #{tpu_custom_call.1} parent=11 // pred_check
          %p151 = pneg %p99
        $region18: #{tpu_custom_call.1} parent=11 // pred_check_branch
          %153 = sbr.rel (%p151) target = $region20
        $region19: #{tpu_custom_call.1} parent=11 // pred_region
          %s155 = ssub.s32 1024, 1024
          %156 = vsyncadd [#allocation8], %s155
          %s157 = sshll.u32 [#allocation7], 4
          %s158 = int_to_ptr.vmem [resolvable:$true] %s157
          %163 = dma.hbm_to_vmem [thread:$0]  %s2, 1024, %s158, [#allocation8], 64, 64, 4
        $region20: #{tpu_custom_call.1} parent=11 // pred_fallthru
          _
      $region12: #{tpu_custom_call.1} parent=5 // pred_fallthru
        _
      %p164 = scmp.lt.s32.totalorder %s17, 2
      // Predicated region
      $region21: #{tpu_custom_call.1} parent=5 // pred_check
        %p165 = pneg %p164
      $region22: #{tpu_custom_call.1} parent=5 // pred_check_branch
        %167 = sbr.rel (%p165) target = $region24
      $region23: #{tpu_custom_call.1} parent=5 // pred_region
        // Predicated region
        $region25: #{tpu_custom_call.1} parent=23 // pred_check
          %p168 = pneg %p72
        $region26: #{tpu_custom_call.1} parent=23 // pred_check_branch
          %170 = sbr.rel (%p168) target = $region28
        $region27: #{tpu_custom_call.1} parent=23 // pred_region
          %s171 = sand.u32 %s62, 1
          %s172 = scalar_lea.sflag [#allocation3], %s171
          %s173 = sand.u32 %s62, 1
          %s174 = smul.addr %s173, 32
          %s175 = scalar_lea.vmem [#allocation6], %s174
          %s177 = ssub.s32 512, 512
          %178 = vsyncadd %s172, %s177
          %s179 = smul.addr %s25, 4
          %s180 = smul.addr %s24, 16
          %s181 = sadd.s32 %s179, %s180
          %s182 = smul.addr %s181, 128
          %s183 = scalar_lea.hbm %s1, %s182
          %s184 = sshll.u32 %s175, 4
          %s185 = int_to_ptr.vmem [resolvable:$true] %s184
          %190 = dma.hbm_to_vmem [thread:$0]  %s183, 512, %s185, %s172, 512, 128, 8
        $region28: #{tpu_custom_call.1} parent=23 // pred_fallthru
          _
      $region24: #{tpu_custom_call.1} parent=5 // pred_fallthru
        _
      %p191 = scmp.le.s32.totalorder 1, %s17
      %p192 = scmp.lt.s32.totalorder %s17, 3
      %p193 = pnand %p191, %p192
      %p194 = pneg %p193
      // Predicated region
      $region29: #{tpu_custom_call.1} parent=5 // pred_check
        _
      $region30: #{tpu_custom_call.1} parent=5 // pred_check_branch
        %196 = sbr.rel (%p193) target = $region32
      $region31: #{tpu_custom_call.1} parent=5 // pred_region
        %s197 = ssub.s32 %s17, 1
        // Predicated region
        $region33: #{tpu_custom_call.1} parent=31 // pred_check
          %p198 = pneg %p50
        $region34: #{tpu_custom_call.1} parent=31 // pred_check_branch
          %200 = sbr.rel (%p198) target = $region36
        $region35: #{tpu_custom_call.1} parent=31 // pred_region
          %201 = dma.done [#allocation5], 16
        $region36: #{tpu_custom_call.1} parent=31 // pred_fallthru
          _
        %s202 = sand.u32 %s65, 1
        %s203 = scalar_lea.sflag [#allocation3], %s202
        %s204 = sand.u32 %s65, 1
        %s205 = smul.addr %s204, 32
        %s206 = scalar_lea.vmem [#allocation6], %s205
        // Predicated region
        $region37: #{tpu_custom_call.1} parent=31 // pred_check
          %p207 = pneg %p78
        $region38: #{tpu_custom_call.1} parent=31 // pred_check_branch
          %209 = sbr.rel (%p207) target = $region40
        $region39: #{tpu_custom_call.1} parent=31 // pred_region
          %210 = dma.done %s203, 512
        $region40: #{tpu_custom_call.1} parent=31 // pred_fallthru
          _
        // Predicated region
        $region41: #{tpu_custom_call.1} parent=31 // pred_check
          %p211 = pneg %p99
        $region42: #{tpu_custom_call.1} parent=31 // pred_check_branch
          %213 = sbr.rel (%p211) target = $region44
        $region43: #{tpu_custom_call.1} parent=31 // pred_region
          %214 = dma.done [#allocation8], 1024
        $region44: #{tpu_custom_call.1} parent=31 // pred_fallthru
          _
        %215 = sfence
        %p216 = pneg %p50
        %p217 = pneg %p47
        %s218 = sand.u32 %s65, 1
        %s219 = scalar_lea.sflag [#allocation3], %s218
        %s220 = sand.u32 %s65, 1
        %s221 = smul.addr %s220, 32
        %s222 = scalar_lea.vmem [#allocation6], %s221
        %p223 = pneg %p78
        %p224 = pneg %p75
        %p225 = pneg %p99
        %p226 = pneg %p96
        %p227 = pneg %p127
        %p228 = pneg %p124
        %s229 = sand.u32 %s114, 1
        %s230 = scalar_lea.sflag [#allocation4], %s229
        %s231 = sand.u32 %s114, 1
        %s232 = smul.addr %s231, 4
        %s233 = scalar_lea.vmem [#allocation9], %s232
        %v235 = vld [vmem:[%s206] sm:$0xff]
        %v236 = vld [vmem:[%s206 + $0x8] sm:$0xff]
        %v237 = vld [vmem:[%s206 + $0x10] sm:$0xff]
        %v238 = vld [vmem:[%s206 + $0x18] sm:$0xff]
        %s239 = sld [smem:[#allocation2]]
        %v240 = vstv %s239
        %v241 = vmul.f32 %v235, %v240
        %s242 = sld [smem:[#allocation2 + $0x1]]
        %v243 = vstv %s242
        %v244 = vmul.f32 %v236, %v243
        %v245 = vadd.f32 %v241, %v244
        %s246 = sld [smem:[#allocation2 + $0x2]]
        %v247 = vstv %s246
        %v248 = vmul.f32 %v237, %v247
        %v249 = vadd.f32 %v245, %v248
        %s250 = sld [smem:[#allocation2 + $0x3]]
        %v251 = vstv %s250
        %v252 = vmul.f32 %v238, %v251
        %v253 = vadd.f32 %v249, %v252
        %s254 = sld [smem:[#allocation2 + $0x4]]
        %v255 = vstv %s254
        %v256 = vadd.f32 %v253, %v255
        %v257 = vpack.c.bf16 %v256, %v256
        %v258 = vld [vmem:[#allocation7] sm:$0xf]
        %v259 = vld [vmem:[#allocation7 + $0x4] sm:$0xf]
        %v260 = vld [vmem:[#allocation7 + $0x8] sm:$0xf]
        %v261 = vld [vmem:[#allocation7 + $0xc] sm:$0xf]
        %v262 = vld [vmem:[#allocation7 + $0x10] sm:$0xf]
        %v263 = vld [vmem:[#allocation7 + $0x14] sm:$0xf]
        %v264 = vld [vmem:[#allocation7 + $0x18] sm:$0xf]
        %v265 = vld [vmem:[#allocation7 + $0x1c] sm:$0xf]
        %v266 = vld [vmem:[#allocation7 + $0x20] sm:$0xf]
        %v267 = vld [vmem:[#allocation7 + $0x24] sm:$0xf]
        %v268 = vld [vmem:[#allocation7 + $0x28] sm:$0xf]
        %v269 = vld [vmem:[#allocation7 + $0x2c] sm:$0xf]
        %v270 = vld [vmem:[#allocation7 + $0x30] sm:$0xf]
        %v271 = vld [vmem:[#allocation7 + $0x34] sm:$0xf]
        %v272 = vld [vmem:[#allocation7 + $0x38] sm:$0xf]
        %v273 = vld [vmem:[#allocation7 + $0x3c] sm:$0xf]
        %v290 = vunpack.c.l.b16 %v258
        %v291 = vunpack.c.l.b16 %v259
        %v292 = vunpack.c.l.b16 %v260
        %v293 = vunpack.c.l.b16 %v261
        %v294 = vunpack.c.l.b16 %v262
        %v295 = vunpack.c.l.b16 %v263
        %v296 = vunpack.c.l.b16 %v264
        %v297 = vunpack.c.l.b16 %v265
        %v298 = vunpack.c.l.b16 %v266
        %v299 = vunpack.c.l.b16 %v267
        %v300 = vunpack.c.l.b16 %v268
        %v301 = vunpack.c.l.b16 %v269
        %v302 = vunpack.c.l.b16 %v270
        %v303 = vunpack.c.l.b16 %v271
        %v304 = vunpack.c.l.b16 %v272
        %v305 = vunpack.c.l.b16 %v273
        %v306 = vpack.c.b16 %v291, %v290
        %v307 = vpack.c.b16 %v293, %v292
        %v308 = vpack.c.b16 %v295, %v294
        %v309 = vpack.c.b16 %v297, %v296
        %v310 = vpack.c.b16 %v299, %v298
        %v311 = vpack.c.b16 %v301, %v300
        %v312 = vpack.c.b16 %v303, %v302
        %v313 = vpack.c.b16 %v305, %v304
        %322 = vmatprep.subr.bf16.mxu0 0
        %323 = vmatpush1.bf16.msra.mxu0 %v306
        %324 = vmatprep.subr.bf16.mxu0 0
        %325 = vmatpush1.bf16.msra.mxu0 %v307
        %326 = vmatprep.subr.bf16.mxu0 0
        %327 = vmatpush1.bf16.msra.mxu0 %v308
        %328 = vmatprep.subr.bf16.mxu0 0
        %329 = vmatpush1.bf16.msra.mxu0 %v309
        %330 = vmatprep.subr.bf16.mxu0 0
        %331 = vmatpush1.bf16.msra.mxu0 %v310
        %332 = vmatprep.subr.bf16.mxu0 0
        %333 = vmatpush1.bf16.msra.mxu0 %v311
        %334 = vmatprep.subr.bf16.mxu0 0
        %335 = vmatpush1.bf16.msra.mxu0 %v312
        %336 = vmatprep.subr.bf16.mxu0 0
        %337 = vmatpush1.bf16.msra.mxu0 %v313
        %338 = vmatprep.subr.bf16.mxu0 0
        %339 = vmatpush1.bf16.msra.mxu0 0
        %340 = vmatprep.subr.bf16.mxu0 0
        %341 = vmatpush1.bf16.msra.mxu0 0
        %342 = vmatprep.subr.bf16.mxu0 0
        %343 = vmatpush1.bf16.msra.mxu0 0
        %344 = vmatprep.subr.bf16.mxu0 0
        %345 = vmatpush1.bf16.msra.mxu0 0
        %346 = vmatprep.subr.bf16.mxu0 0
        %347 = vmatpush1.bf16.msra.mxu0 0
        %348 = vmatprep.subr.bf16.mxu0 0
        %349 = vmatpush1.bf16.msra.mxu0 0
        %350 = vmatprep.subr.bf16.mxu0 0
        %351 = vmatpush1.bf16.msra.mxu0 0
        %352 = vmatprep.subr.bf16.mxu0 0
        %353 = vmatpush1.bf16.msra.mxu0 0
        %354 = vmatprep.mubr.bf16.mxu0 0
        %355 = vmatmul.mubr.bf16.gmra.mrb[0].mxu0 %v257
        %v356 = vpop.f32.mrb[0].mxu0
        %v357 = vadd.f32 0.0, %v356
        %v358 = vpop.f32.mrb[0].mxu0
        %v359 = vpop.f32.mrb[0].mxu0
        %v360 = vpop.f32.mrb[0].mxu0
        %361 = vdwg.mxu0
        %v362 = vpack.c.bf16 %v357, %v357
        %363 = vst [vmem:[%s233] sm:$0xf] %v362
        %s364 = sand.u32 %s114, 1
        %s365 = scalar_lea.sflag [#allocation4], %s364
        %s366 = sand.u32 %s114, 1
        %s367 = smul.addr %s366, 4
        %s368 = scalar_lea.vmem [#allocation9], %s367
        // Predicated region
        $region45: #{tpu_custom_call.1} parent=31 // pred_check
          %p369 = pneg %p124
        $region46: #{tpu_custom_call.1} parent=31 // pred_check_branch
          %371 = sbr.rel (%p369) target = $region48
        $region47: #{tpu_custom_call.1} parent=31 // pred_region
          %s373 = ssub.s32 64, 64
          %374 = vsyncadd %s365, %s373
          %s375 = sadd.s32 %s27, %s26
          %s376 = smul.addr %s375, 64
          %s377 = scalar_lea.hbm %s3, %s376
          %s379 = sshll.u32 %s368, 4
          %s380 = int_to_ptr.vmem [resolvable:$true] %s379
          %382 = dma.vmem_to_hbm [thread:$0]  %s380, 64, %s377, %s365
        $region48: #{tpu_custom_call.1} parent=31 // pred_fallthru
          _
      $region32: #{tpu_custom_call.1} parent=5 // pred_fallthru
        _
      %p383 = scmp.le.s32.totalorder 2, %s17
      // Predicated region
      $region49: #{tpu_custom_call.1} parent=5 // pred_check
        %p384 = pneg %p383
      $region50: #{tpu_custom_call.1} parent=5 // pred_check_branch
        %386 = sbr.rel (%p384) target = $region52
      $region51: #{tpu_custom_call.1} parent=5 // pred_region
        %s387 = ssub.s32 %s17, 2
        // Predicated region
        $region53: #{tpu_custom_call.1} parent=51 // pred_check
          %p388 = pneg %p130
        $region54: #{tpu_custom_call.1} parent=51 // pred_check_branch
          %390 = sbr.rel (%p388) target = $region56
        $region55: #{tpu_custom_call.1} parent=51 // pred_region
          %s391 = sand.u32 %s115, 1
          %s392 = scalar_lea.sflag [#allocation4], %s391
          %s393 = sand.u32 %s115, 1
          %s394 = smul.addr %s393, 4
          %s395 = scalar_lea.vmem [#allocation9], %s394
          %396 = dma.done %s392, 64
        $region56: #{tpu_custom_call.1} parent=51 // pred_fallthru
          _
      $region52: #{tpu_custom_call.1} parent=5 // pred_fallthru
        _
    $region6: #{tpu_custom_call.1} parent=1 // loop_footer
      %s21 = sadd.s32 1, %s17
    $region7: #{tpu_custom_call.1} parent=1 // loop_footer_branch
      %16 = sbr.rel target = $region3
    $region8: #{tpu_custom_call.1} parent=1 // loop_exit
      _
    %397 = vsyncpa [#allocation3], 1
    %s398 = scalar_lea.sflag [#allocation3], 1
    %399 = vsyncpa %s398, 1
    %400 = vsyncpa [#allocation8], 1
    %401 = vsyncpa [#allocation4], 1
    %s402 = scalar_lea.sflag [#allocation4], 1
    %403 = vsyncpa %s402, 1
    %404 = vsyncpa [#allocation5], 1
    %s405 = scalar_lea.sflag [#allocation5], 1
    %406 = vsyncpa %s405, 1

</llo_original>
